<compile_context>
chip_gen: v7x
topology: tpu7x:2x2x1
jax: 0.10.0
libtpu: 0.0.40
codegen_flags: <defaults>
</compile_context>

<pallas_src>
import jax
import jax.numpy as jnp
from jax.experimental import pallas as pl
from jax.experimental.pallas import tpu as pltpu


def ffn_kernel(x_ref, w1_ref, b1_ref, w2_ref, b2_ref, out_ref, acc_ref):
    """One (row-tile, F-tile) step of  ReLU(x @ W1 + b1) @ W2 + b2."""
    f = pl.program_id(1)

    @pl.when(f == 0)
    def _init():
        acc_ref[...] = jnp.zeros_like(acc_ref)

    # Linear1 on this F tile (MXU, f32 accumulation) + bias + ReLU (VPU).
    h = jnp.dot(x_ref[...], w1_ref[...], preferred_element_type=jnp.float32)
    h = h + b1_ref[...].astype(jnp.float32)
    h = jnp.maximum(h, 0.0)
    # TODO(synk): nn.Dropout reproduced in eval mode (identity); a training-mode
    # path would use pltpu.prng_seed / pltpu.prng_random_bits to build the mask.

    # Linear2 partial contribution of this F tile, accumulated in f32 VMEM.
    acc_ref[...] += jnp.dot(
        h.astype(w2_ref.dtype), w2_ref[...], preferred_element_type=jnp.float32
    )

    @pl.when(f == pl.num_programs(1) - 1)
    def _finalize():
        out_ref[...] = (
            acc_ref[...] + b2_ref[...].astype(jnp.float32)
        ).astype(out_ref.dtype)


def _pick_tile(n, cap, mult):
    """Largest divisor of n that is <= cap and a multiple of `mult`, else n."""
    if n <= cap:
        return n
    t = (cap // mult) * mult
    while t >= mult:
        if n % t == 0:
            return t
        t -= mult
    return n


def feed_forward(x, w1, b1, w2, b2, *, row_tile=None, f_tile=None):
    """Pallas forward of FeedForwardModule.

    x: (..., D); w1: (D, F); b1: (F,); w2: (F, D); b2: (D,)
    (weights pre-transposed to (in_features, out_features)).
    """
    orig_shape = x.shape
    D = orig_shape[-1]
    F = w1.shape[1]
    xm = x.reshape(-1, D)
    M = xm.shape[0]
    b1 = b1.reshape(1, F)
    b2 = b2.reshape(1, D)

    # Row tile: biggest that keeps the per-step VMEM footprint modest; pad M
    # up to a multiple so arbitrary batch*seq works.
    TM = row_tile if row_tile is not None else min(max(8, ((M + 7) // 8) * 8), 512)
    TF = f_tile if f_tile is not None else _pick_tile(F, 512, 128)
    assert F % TF == 0, (F, TF)

    Mp = ((M + TM - 1) // TM) * TM
    if Mp != M:
        xm = jnp.pad(xm, ((0, Mp - M), (0, 0)))

    grid = (Mp // TM, F // TF)

    # Explicit scoped-VMEM budget: double-buffered I/O tiles + f32 accumulator.
    dsize = x.dtype.itemsize
    tile_bytes = (TM * D + D * TF + TF + TF * D + D + TM * D) * dsize
    vmem_bytes = 2 * tile_bytes + TM * D * 4 + (8 << 20)
    vmem_bytes = int(max(min(vmem_bytes, 100 << 20), 16 << 20))

    out = pl.pallas_call(
        ffn_kernel,
        out_shape=jax.ShapeDtypeStruct((Mp, D), x.dtype),
        grid_spec=pltpu.PrefetchScalarGridSpec(
            num_scalar_prefetch=0,
            grid=grid,
            in_specs=[
                pl.BlockSpec((TM, D), lambda i, f: (i, 0)),   # x row tile (resident along f)
                pl.BlockSpec((D, TF), lambda i, f: (0, f)),   # W1 column tile
                pl.BlockSpec((1, TF), lambda i, f: (0, f)),   # b1 tile
                pl.BlockSpec((TF, D), lambda i, f: (f, 0)),   # W2 row tile
                pl.BlockSpec((1, D), lambda i, f: (0, 0)),    # b2 (constant)
            ],
            out_specs=pl.BlockSpec((TM, D), lambda i, f: (i, 0)),
            scratch_shapes=[pltpu.VMEM((TM, D), jnp.float32)],
        ),
        compiler_params=pltpu.CompilerParams(
            dimension_semantics=("parallel", "arbitrary"),
            vmem_limit_bytes=vmem_bytes,
        ),
    )(xm, w1, b1, w2, b2)

    if Mp != M:
        out = out[:M]
    return out.reshape(orig_shape)


# -------- pure-JAX reference mirroring the PyTorch forward (eval mode) --------
def feed_forward_ref(x, w1, b1, w2, b2):
    h = jnp.maximum(x @ w1 + b1.reshape(-1), 0.0)
    return h @ w2 + b2.reshape(-1)


if __name__ == "__main__":
    # Small shapes consistent with the module: batch=2, seq=16, model_dim=128,
    # forward_expansion=4  ->  F = 512.  Row tile 16, F tile 256 so both the
    # parallel row axis (2 tiles) and the F-reduction axis (2 tiles) are
    # exercised, including the accumulator init/finalize phases.
    B, S, D = 2, 16, 128
    EXPANSION = 4
    F = D * EXPANSION

    key = jax.random.PRNGKey(0)
    kx, k1, kb1, k2, kb2 = jax.random.split(key, 5)

    x = jax.random.normal(kx, (B, S, D), jnp.float32)
    w1 = jax.random.normal(k1, (D, F), jnp.float32) / jnp.sqrt(D)
    b1 = jax.random.normal(kb1, (F,), jnp.float32) * 0.1
    w2 = jax.random.normal(k2, (F, D), jnp.float32) / jnp.sqrt(F)
    b2 = jax.random.normal(kb2, (D,), jnp.float32) * 0.1

    ref = feed_forward_ref(x, w1, b1, w2, b2)

    # f32 path: tight correctness check.
    out = feed_forward(x, w1, b1, w2, b2, row_tile=16, f_tile=256)
    out = jax.block_until_ready(out)
    assert out.shape == (B, S, D)
    assert jnp.allclose(out, ref, atol=1e-4, rtol=1e-4), float(
        jnp.max(jnp.abs(out - ref))
    )

    # Default (auto-tile) path: padding logic + single-F-tile case.
    out_auto = jax.block_until_ready(feed_forward(x, w1, b1, w2, b2))
    assert jnp.allclose(out_auto, ref, atol=1e-4, rtol=1e-4), float(
        jnp.max(jnp.abs(out_auto - ref))
    )

    # bf16 weights/activations (MXU-native on v6e/v7x) with f32 accumulation.
    out_bf16 = feed_forward(
        x.astype(jnp.bfloat16),
        w1.astype(jnp.bfloat16), b1.astype(jnp.bfloat16),
        w2.astype(jnp.bfloat16), b2.astype(jnp.bfloat16),
        row_tile=16, f_tile=256,
    )
    out_bf16 = jax.block_until_ready(out_bf16)
    assert jnp.allclose(out_bf16.astype(jnp.float32), ref, atol=1e-1, rtol=1e-1), float(
        jnp.max(jnp.abs(out_bf16.astype(jnp.float32) - ref))
    )

    print("KERNEL_OK")
</pallas_src>

<mosaic_0001>
module attributes {stable_mosaic.version = 11 : i64} {
  func.func @ffn_kernel(%arg0: i32, %arg1: i32, %arg2: memref<16x128xf32, #tpu.memory_space<vmem>>, %arg3: memref<128x256xf32, #tpu.memory_space<vmem>>, %arg4: memref<1x256xf32, #tpu.memory_space<vmem>>, %arg5: memref<256x128xf32, #tpu.memory_space<vmem>>, %arg6: memref<1x128xf32, #tpu.memory_space<vmem>>, %arg7: memref<16x128xf32, #tpu.memory_space<vmem>>, %arg8: memref<16x128xf32, #tpu.memory_space<vmem>>) attributes {dimension_semantics = [#tpu.dimension_semantics<parallel>, #tpu.dimension_semantics<arbitrary>], iteration_bounds = array<i64: 2, 2>, scalar_prefetch = 0 : i64, scratch_operands = 1 : i64, tpu.core_type = #tpu.core_type<tc>, window_params = [{transform_indices = @transform_0, window_bounds = array<i64: 16, 128>}, {transform_indices = @transform_1, window_bounds = array<i64: 128, 256>}, {transform_indices = @transform_2, window_bounds = array<i64: 1, 256>}, {transform_indices = @transform_3, window_bounds = array<i64: 256, 128>}, {pipeline_mode = #tpu.pipeline_mode<synchronous>, transform_indices = @transform_4, window_bounds = array<i64: 1, 128>}, {transform_indices = @transform_5, window_bounds = array<i64: 16, 128>}]} {
    %c0_i32 = arith.constant 0 : i32
    %0 = arith.cmpi eq, %arg1, %c0_i32 : i32
    %1 = arith.extui %0 : i1 to i32
    %c0_i32_0 = arith.constant 0 : i32
    %2 = arith.cmpi ne, %1, %c0_i32_0 : i32
    scf.if %2 {
      %cst_15 = arith.constant 0.000000e+00 : f32
      %19 = vector.broadcast %cst_15 : f32 to vector<16x128xf32>
      %c0_16 = arith.constant 0 : index
      %c0_17 = arith.constant 0 : index
      %20 = vector.load %arg8[%c0_16, %c0_17] : memref<16x128xf32, #tpu.memory_space<vmem>>, vector<16x128xf32>
      tpu.vector_store %arg8[%c0_16, %c0_17], %19 {strides = array<i32>} : memref<16x128xf32, #tpu.memory_space<vmem>>, vector<16x128xf32>,
    } else {
    }
    %c0 = arith.constant 0 : index
    %c0_1 = arith.constant 0 : index
    %3 = vector.load %arg2[%c0, %c0_1] : memref<16x128xf32, #tpu.memory_space<vmem>>, vector<16x128xf32>
    %c0_2 = arith.constant 0 : index
    %c0_3 = arith.constant 0 : index
    %4 = vector.load %arg3[%c0_2, %c0_3] : memref<128x256xf32, #tpu.memory_space<vmem>>, vector<128x256xf32>
    %cst = arith.constant dense<0.000000e+00> : vector<16x256xf32>
    %5 = tpu.matmul %3, %4, %cst {dimension_numbers = #tpu.dot_dimension_numbers<[1], [0], [0], [1], [0, 0, 1, 1], [], []>} : vector<16x128xf32>, vector<128x256xf32>, vector<16x256xf32> -> vector<16x256xf32>
    %c0_4 = arith.constant 0 : index
    %c0_5 = arith.constant 0 : index
    %6 = vector.load %arg4[%c0_4, %c0_5] : memref<1x256xf32, #tpu.memory_space<vmem>>, vector<1x256xf32>
    %7 = vector.broadcast %6 : vector<1x256xf32> to vector<16x256xf32>
    %8 = arith.addf %5, %7 : vector<16x256xf32>
    %cst_6 = arith.constant 0.000000e+00 : f32
    %9 = vector.broadcast %cst_6 : f32 to vector<16x256xf32>
    %10 = arith.maximumf %8, %9 : vector<16x256xf32>
    %c0_7 = arith.constant 0 : index
    %c0_8 = arith.constant 0 : index
    %11 = vector.load %arg8[%c0_7, %c0_8] : memref<16x128xf32, #tpu.memory_space<vmem>>, vector<16x128xf32>
    %c0_9 = arith.constant 0 : index
    %c0_10 = arith.constant 0 : index
    %12 = vector.load %arg5[%c0_9, %c0_10] : memref<256x128xf32, #tpu.memory_space<vmem>>, vector<256x128xf32>
    %cst_11 = arith.constant dense<0.000000e+00> : vector<16x128xf32>
    %13 = tpu.matmul %10, %12, %cst_11 {dimension_numbers = #tpu.dot_dimension_numbers<[1], [0], [0], [1], [0, 0, 1, 1], [], []>} : vector<16x256xf32>, vector<256x128xf32>, vector<16x128xf32> -> vector<16x128xf32>
    %14 = arith.addf %11, %13 : vector<16x128xf32>
    %c0_12 = arith.constant 0 : index
    %c0_13 = arith.constant 0 : index
    %15 = vector.load %arg8[%c0_12, %c0_13] : memref<16x128xf32, #tpu.memory_space<vmem>>, vector<16x128xf32>
    tpu.vector_store %arg8[%c0_12, %c0_13], %14 {strides = array<i32>} : memref<16x128xf32, #tpu.memory_space<vmem>>, vector<16x128xf32>,
    %c1_i32 = arith.constant 1 : i32
    %16 = arith.cmpi eq, %arg1, %c1_i32 : i32
    %17 = arith.extui %16 : i1 to i32
    %c0_i32_14 = arith.constant 0 : i32
    %18 = arith.cmpi ne, %17, %c0_i32_14 : i32
    scf.if %18 {
      %c0_15 = arith.constant 0 : index
      %c0_16 = arith.constant 0 : index
      %19 = vector.load %arg8[%c0_15, %c0_16] : memref<16x128xf32, #tpu.memory_space<vmem>>, vector<16x128xf32>
      %c0_17 = arith.constant 0 : index
      %c0_18 = arith.constant 0 : index
      %20 = vector.load %arg6[%c0_17, %c0_18] : memref<1x128xf32, #tpu.memory_space<vmem>>, vector<1x128xf32>
      %21 = vector.broadcast %20 : vector<1x128xf32> to vector<16x128xf32>
      %22 = arith.addf %19, %21 : vector<16x128xf32>
      %c0_19 = arith.constant 0 : index
      %c0_20 = arith.constant 0 : index
      %23 = vector.load %arg7[%c0_19, %c0_20] : memref<16x128xf32, #tpu.memory_space<vmem>>, vector<16x128xf32>
      tpu.vector_store %arg7[%c0_19, %c0_20], %22 {strides = array<i32>} : memref<16x128xf32, #tpu.memory_space<vmem>>, vector<16x128xf32>,
    } else {
    }
    return
  }
  func.func @transform_0(%arg0: i32, %arg1: i32) -> (i32, i32) {
    %c0_i32 = arith.constant 0 : i32
    %c0_i32_0 = arith.constant 0 : i32
    return %arg0, %c0_i32 : i32, i32
  }
  func.func @transform_1(%arg0: i32, %arg1: i32) -> (i32, i32) {
    %c0_i32 = arith.constant 0 : i32
    %c0_i32_0 = arith.constant 0 : i32
    return %c0_i32, %arg1 : i32, i32
  }
  func.func @transform_2(%arg0: i32, %arg1: i32) -> (i32, i32) {
    %c0_i32 = arith.constant 0 : i32
    %c0_i32_0 = arith.constant 0 : i32
    return %c0_i32, %arg1 : i32, i32
  }
  func.func @transform_3(%arg0: i32, %arg1: i32) -> (i32, i32) {
    %c0_i32 = arith.constant 0 : i32
    %c0_i32_0 = arith.constant 0 : i32
    return %arg1, %c0_i32 : i32, i32
  }
  func.func @transform_4(%arg0: i32, %arg1: i32) -> (i32, i32) {
    %c0_i32 = arith.constant 0 : i32
    %c0_i32_0 = arith.constant 0 : i32
    %c0_i32_1 = arith.constant 0 : i32
    return %c0_i32, %c0_i32_0 : i32, i32
  }
  func.func @transform_5(%arg0: i32, %arg1: i32) -> (i32, i32) {
    %c0_i32 = arith.constant 0 : i32
    %c0_i32_0 = arith.constant 0 : i32
    return %arg0, %c0_i32 : i32, i32
  }
}

</mosaic_0001>

<llo_original>
// kernel: tpu_custom_call.1
$region0: #{tpu_custom_call.1}
  #allocation0 [shape = 'u32[]', space=smem, size = 0x4, offset = 0x4, fixed_abs, tag = 'smem constant byte address 0x4 - core index']
  #allocation1 [shape = 'u32[144,128]{1,0:T(1,128)}', space=vmem, size = 0x12000, scoped, tag = 'internal scratch']
  #allocation2 [shape = 'f32[16,128]{1,0:T(8,128)}', space=vmem, size = 0x2000, scoped, tag = 'scratch operand']
  %s0 = inlined_call_operand.hbm [shape: f32[32,128], index: 0, kind: input, shape index: {}]
  %s1 = inlined_call_operand.hbm [shape: f32[128,512], index: 1, kind: input, shape index: {}]
  %s2 = inlined_call_operand.vmem [shape: f32[1,512], index: 2, kind: input, shape index: {}]
  %s3 = inlined_call_operand.hbm [shape: f32[512,128], index: 3, kind: input, shape index: {}]
  %s4 = inlined_call_operand.vmem [shape: f32[1,128], index: 4, kind: input, shape index: {}]
  %s5 = inlined_call_operand.hbm [shape: f32[32,128], index: 5, kind: output, shape index: {}]
  %s6 = sld [smem:[#allocation0]]
  $region73: #{tpu_custom_call.1} parent=0
    _
  %s8 = ssub.s32 1, %s6
  %s9 = scalar_select 0, %s8, %s6
  $region1: #{tpu_custom_call.1} parent=0
    #allocation3 [shape = 'u8[16384]{0}', space=vmem, size = 0x4000, scoped, tag = 'input window, operand 0']
    #allocation4 [shape = 's32[2]{0}', space=sflag, size = 0x8, scoped, tag = 'scoped memory for tpu_custom_call.1']
    #allocation5 [shape = 's32[2]{0}', space=sflag, size = 0x8, scoped, tag = 'scoped memory for tpu_custom_call.1']
    #allocation6 [shape = 'u8[262144]{0}', space=vmem, size = 0x40000, scoped, tag = 'input window, operand 1']
    #allocation7 [shape = 's32[2]{0}', space=sflag, size = 0x8, scoped, tag = 'scoped memory for tpu_custom_call.1']
    #allocation8 [shape = 'u8[262144]{0}', space=vmem, size = 0x40000, scoped, tag = 'input window, operand 3']
    #allocation9 [shape = 'u8[16384]{0}', space=vmem, size = 0x4000, scoped, tag = 'output window, operand 0']
    %10 = vsyncpa [#allocation4], 0
    %s11 = scalar_lea.sflag [#allocation4], 1
    %12 = vsyncpa %s11, 0
    %13 = vsyncpa [#allocation7], 0
    %s14 = scalar_lea.sflag [#allocation7], 1
    %15 = vsyncpa %s14, 0
    %16 = vsyncpa [#allocation5], 0
    %s17 = scalar_lea.sflag [#allocation5], 1
    %18 = vsyncpa %s17, 0
    loop: start=0, step=1, limit=6
    $region2: #{tpu_custom_call.1} parent=1 // loop_pre_header
      _
    $region3: #{tpu_custom_call.1} parent=1 // loop_header
      %s20 = sphi 0, %s24
      %p21 = scmp.ge.s32.totalorder %s20, 6
      %s27 = sphi 0, %s39
      %s28 = sphi 0, %s35
      %s29 = sphi 0, %s27
      %s30 = sphi 0, %s28
      %s31 = sphi 0, %s29
      %s32 = sphi 0, %s30
      %s42 = sphi 0, %s44
      %s45 = sphi 0, %s42
      %s46 = sphi 0, %s45
      %s62 = sphi 0, %s46
      %s68 = sphi 0, %s70
      %s71 = sphi 0, %s68
      %s72 = sphi 0, %s71
      %s88 = sphi 0, %s72
      %s94 = sphi 0, %s96
      %s97 = sphi 0, %s94
      %s98 = sphi 0, %s97
      %s114 = sphi 0, %s98
      %s120 = sphi 0, %s122
      %s123 = sphi 0, %s120
      %s124 = sphi 0, %s123
      %s140 = sphi 0, %s124
      %s144 = sphi 0, %s144
      %s146 = sphi 0, %s144
      %s147 = sphi 0, %s146
      %s161 = sphi 0, %s147
      %s167 = sphi 0, %s169
      %s170 = sphi 0, %s167
      %s171 = sphi 0, %s170
      %s187 = sphi 0, %s171
    $region4: #{tpu_custom_call.1} parent=1 // loop_header_branch
      %23 = sbr.rel (%p21) target = $region8
    $region5: #{tpu_custom_call.1} parent=1 // loop_body
      %s25 = ssub.s32 %s20, 1
      %s26 = ssub.s32 %s20, 2
      %s33 = sadd.s32 1, %s28
      %p34 = scmp.ge.s32.totalorder %s33, 2
      %s35 = scalar_select %p34, 0, %s33
      %s36 = sadd.s32 1, %s27
      %s37 = scalar_select %p34, %s36, %s27
      %p38 = scmp.ge.s32.totalorder %s37, 2
      %s39 = scalar_select %p38, 0, %s37
      %s40 = ssub.s32 %s27, %s39
      %p41 = scmp.eq.s32.totalorder %s40, 0
      %s43 = sadd.s32 %s42, 1
      %s44 = scalar_select %p41, %s42, %s43
      %p47 = pneg %p41
      %p48 = scmp.eq.s32.totalorder %s20, 3
      %p49 = por %p47, %p48
      %p50 = scmp.ne.s32.totalorder %s42, %s45
      %p51 = scmp.eq.s32.totalorder %s20, 0
      %p52 = por %p50, %p51
      %p53 = scmp.ne.s32.totalorder %s42, %s45
      %p54 = scmp.eq.s32.totalorder %s25, 3
      %p55 = por %p53, %p54
      %p56 = scmp.ne.s32.totalorder %s45, %s46
      %p57 = scmp.eq.s32.totalorder %s25, 0
      %p58 = por %p56, %p57
      %p59 = scmp.ne.s32.totalorder %s45, %s46
      %p60 = scmp.eq.s32.totalorder %s26, 3
      %p61 = por %p59, %p60
      %p63 = scmp.ne.s32.totalorder %s46, %s62
      %p64 = scmp.eq.s32.totalorder %s26, 0
      %p65 = por %p63, %p64
      %s66 = ssub.s32 %s28, %s35
      %p67 = scmp.eq.s32.totalorder %s66, 0
      %s69 = sadd.s32 %s68, 1
      %s70 = scalar_select %p67, %s68, %s69
      %p73 = pneg %p67
      %p74 = scmp.eq.s32.totalorder %s20, 3
      %p75 = por %p73, %p74
      %p76 = scmp.ne.s32.totalorder %s68, %s71
      %p77 = scmp.eq.s32.totalorder %s20, 0
      %p78 = por %p76, %p77
      %p79 = scmp.ne.s32.totalorder %s68, %s71
      %p80 = scmp.eq.s32.totalorder %s25, 3
      %p81 = por %p79, %p80
      %p82 = scmp.ne.s32.totalorder %s71, %s72
      %p83 = scmp.eq.s32.totalorder %s25, 0
      %p84 = por %p82, %p83
      %p85 = scmp.ne.s32.totalorder %s71, %s72
      %p86 = scmp.eq.s32.totalorder %s26, 3
      %p87 = por %p85, %p86
      %p89 = scmp.ne.s32.totalorder %s72, %s88
      %p90 = scmp.eq.s32.totalorder %s26, 0
      %p91 = por %p89, %p90
      %s92 = ssub.s32 %s28, %s35
      %p93 = scmp.eq.s32.totalorder %s92, 0
      %s95 = sadd.s32 %s94, 1
      %s96 = scalar_select %p93, %s94, %s95
      %p99 = pneg %p93
      %p100 = scmp.eq.s32.totalorder %s20, 3
      %p101 = por %p99, %p100
      %p102 = scmp.ne.s32.totalorder %s94, %s97
      %p103 = scmp.eq.s32.totalorder %s20, 0
      %p104 = por %p102, %p103
      %p105 = scmp.ne.s32.totalorder %s94, %s97
      %p106 = scmp.eq.s32.totalorder %s25, 3
      %p107 = por %p105, %p106
      %p108 = scmp.ne.s32.totalorder %s97, %s98
      %p109 = scmp.eq.s32.totalorder %s25, 0
      %p110 = por %p108, %p109
      %p111 = scmp.ne.s32.totalorder %s97, %s98
      %p112 = scmp.eq.s32.totalorder %s26, 3
      %p113 = por %p111, %p112
      %p115 = scmp.ne.s32.totalorder %s98, %s114
      %p116 = scmp.eq.s32.totalorder %s26, 0
      %p117 = por %p115, %p116
      %s118 = ssub.s32 %s28, %s35
      %p119 = scmp.eq.s32.totalorder %s118, 0
      %s121 = sadd.s32 %s120, 1
      %s122 = scalar_select %p119, %s120, %s121
      %p125 = pneg %p119
      %p126 = scmp.eq.s32.totalorder %s20, 3
      %p127 = por %p125, %p126
      %p128 = scmp.ne.s32.totalorder %s120, %s123
      %p129 = scmp.eq.s32.totalorder %s20, 0
      %p130 = por %p128, %p129
      %p131 = scmp.ne.s32.totalorder %s120, %s123
      %p132 = scmp.eq.s32.totalorder %s25, 3
      %p133 = por %p131, %p132
      %p134 = scmp.ne.s32.totalorder %s123, %s124
      %p135 = scmp.eq.s32.totalorder %s25, 0
      %p136 = por %p134, %p135
      %p137 = scmp.ne.s32.totalorder %s123, %s124
      %p138 = scmp.eq.s32.totalorder %s26, 3
      %p139 = por %p137, %p138
      %p141 = scmp.ne.s32.totalorder %s124, %s140
      %p142 = scmp.eq.s32.totalorder %s26, 0
      %p143 = por %p141, %p142
      %s145 = sadd.s32 %s144, 1
      %p148 = scmp.eq.s32.totalorder %s20, 3
      %p149 = scmp.ne.s32.totalorder %s144, %s146
      %p150 = scmp.eq.s32.totalorder %s20, 0
      %p151 = por %p149, %p150
      %p152 = scmp.ne.s32.totalorder %s144, %s146
      %p153 = scmp.eq.s32.totalorder %s25, 3
      %p154 = por %p152, %p153
      %p155 = scmp.ne.s32.totalorder %s146, %s147
      %p156 = scmp.eq.s32.totalorder %s25, 0
      %p157 = por %p155, %p156
      %p158 = scmp.ne.s32.totalorder %s146, %s147
      %p159 = scmp.eq.s32.totalorder %s26, 3
      %p160 = por %p158, %p159
      %p162 = scmp.ne.s32.totalorder %s147, %s161
      %p163 = scmp.eq.s32.totalorder %s26, 0
      %p164 = por %p162, %p163
      %s165 = ssub.s32 %s27, %s39
      %p166 = scmp.eq.s32.totalorder %s165, 0
      %s168 = sadd.s32 %s167, 1
      %s169 = scalar_select %p166, %s167, %s168
      %p172 = pneg %p166
      %p173 = scmp.eq.s32.totalorder %s20, 3
      %p174 = por %p172, %p173
      %p175 = scmp.ne.s32.totalorder %s167, %s170
      %p176 = scmp.eq.s32.totalorder %s20, 0
      %p177 = por %p175, %p176
      %p178 = scmp.ne.s32.totalorder %s167, %s170
      %p179 = scmp.eq.s32.totalorder %s25, 3
      %p180 = por %p178, %p179
      %p181 = scmp.ne.s32.totalorder %s170, %s171
      %p182 = scmp.eq.s32.totalorder %s25, 0
      %p183 = por %p181, %p182
      %p184 = scmp.ne.s32.totalorder %s170, %s171
      %p185 = scmp.eq.s32.totalorder %s26, 3
      %p186 = por %p184, %p185
      %p188 = scmp.ne.s32.totalorder %s171, %s187
      %p189 = scmp.eq.s32.totalorder %s26, 0
      %p190 = por %p188, %p189
      %p191 = scmp.le.s32.totalorder 1, %s20
      %p192 = scmp.lt.s32.totalorder %s20, 5
      %p193 = pnand %p191, %p192
      %p194 = pneg %p193
      // Predicated region
      $region9: #{tpu_custom_call.1} parent=5 // pred_check
        _
      $region10: #{tpu_custom_call.1} parent=5 // pred_check_branch
        %196 = sbr.rel (%p193) target = $region12
      $region11: #{tpu_custom_call.1} parent=5 // pred_region
        %s197 = ssub.s32 %s20, 1
        // Predicated region
        $region13: #{tpu_custom_call.1} parent=11 // pred_check
          %p198 = pneg %p157
        $region14: #{tpu_custom_call.1} parent=11 // pred_check_branch
          %200 = sbr.rel (%p198) target = $region16
        $region15: #{tpu_custom_call.1} parent=11 // pred_region
          _
        $region16: #{tpu_custom_call.1} parent=11 // pred_fallthru
          _
      $region12: #{tpu_custom_call.1} parent=5 // pred_fallthru
        _
      %p201 = scmp.lt.s32.totalorder %s20, 4
      // Predicated region
      $region17: #{tpu_custom_call.1} parent=5 // pred_check
        %p202 = pneg %p201
      $region18: #{tpu_custom_call.1} parent=5 // pred_check_branch
        %204 = sbr.rel (%p202) target = $region20
      $region19: #{tpu_custom_call.1} parent=5 // pred_region
        // Predicated region
        $region21: #{tpu_custom_call.1} parent=19 // pred_check
          %p205 = pneg %p52
        $region22: #{tpu_custom_call.1} parent=19 // pred_check_branch
          %207 = sbr.rel (%p205) target = $region24
        $region23: #{tpu_custom_call.1} parent=19 // pred_region
          %s208 = sand.u32 %s42, 1
          %s209 = scalar_lea.sflag [#allocation4], %s208
          %s210 = sand.u32 %s42, 1
          %s211 = smul.addr %s210, 16
          %s212 = scalar_lea.vmem [#allocation3], %s211
          %s213 = smul.u32 2, %s27
          %s215 = ssub.s32 256, 256
          %216 = vsyncadd %s209, %s215
          %s217 = smul.addr %s213, 128
          %s218 = scalar_lea.hbm %s0, %s217
          %s219 = sshll.u32 %s212, 4
          %s220 = int_to_ptr.vmem [resolvable:$true] %s219
          %225 = dma.hbm_to_vmem [thread:$0]  %s218, 256, %s220, %s209, 128, 128, 8
        $region24: #{tpu_custom_call.1} parent=19 // pred_fallthru
          _
        // Predicated region
        $region25: #{tpu_custom_call.1} parent=19 // pred_check
          %p226 = pneg %p78
        $region26: #{tpu_custom_call.1} parent=19 // pred_check_branch
          %228 = sbr.rel (%p226) target = $region28
        $region27: #{tpu_custom_call.1} parent=19 // pred_region
          %s229 = sand.u32 %s20, 1
          %s230 = scalar_lea.sflag [#allocation7], %s229
          %s231 = sand.u32 %s68, 1
          %s232 = smul.addr %s231, 256
          %s233 = scalar_lea.vmem [#allocation6], %s232
          %s234 = smul.u32 2, %s28
          %s236 = ssub.s32 4096, 4096
          %237 = vsyncadd %s230, %s236
          %s238 = smul.addr %s234, 128
          %s239 = scalar_lea.hbm %s1, %s238
          %s240 = sshll.u32 %s233, 4
          %s241 = int_to_ptr.vmem [resolvable:$true] %s240
          %246 = dma.hbm_to_vmem [thread:$0]  %s239, 4096, %s241, %s230, 512, 256, 16
        $region28: #{tpu_custom_call.1} parent=19 // pred_fallthru
          _
        // Predicated region
        $region29: #{tpu_custom_call.1} parent=19 // pred_check
          %p247 = pneg %p104
        $region30: #{tpu_custom_call.1} parent=19 // pred_check_branch
          %249 = sbr.rel (%p247) target = $region32
        $region31: #{tpu_custom_call.1} parent=19 // pred_region
          %s250 = smul.u32 2, %s28
          %p251 = scmp.lt.s32.totalorder %s250, 3
          %s252 = scalar_select %p251, %s250, 3
          %s253 = scalar_lea.vmem %s2, %s252
          %s254 = smul.u32 2, %s28
        $region32: #{tpu_custom_call.1} parent=19 // pred_fallthru
          _
        // Predicated region
        $region33: #{tpu_custom_call.1} parent=19 // pred_check
          %p255 = pneg %p130
        $region34: #{tpu_custom_call.1} parent=19 // pred_check_branch
          %257 = sbr.rel (%p255) target = $region36
        $region35: #{tpu_custom_call.1} parent=19 // pred_region
          %s258 = sand.u32 %s20, 1
          %s259 = scalar_lea.sflag [#allocation7], %s258
          %s260 = sand.u32 %s120, 1
          %s261 = smul.addr %s260, 256
          %s262 = scalar_lea.vmem [#allocation8], %s261
          %s263 = smul.u32 32, %s28
          %s265 = ssub.s32 4096, 4096
          %266 = vsyncadd %s259, %s265
          %s267 = smul.addr %s263, 128
          %s268 = scalar_lea.hbm %s3, %s267
          %s269 = sshll.u32 %s262, 4
          %s270 = int_to_ptr.vmem [resolvable:$true] %s269
          %275 = dma.hbm_to_vmem [thread:$0]  %s268, 4096, %s270, %s259, 128, 128, 8
        $region36: #{tpu_custom_call.1} parent=19 // pred_fallthru
          _
      $region20: #{tpu_custom_call.1} parent=5 // pred_fallthru
        _
      %p276 = scmp.le.s32.totalorder 1, %s20
      %p277 = scmp.lt.s32.totalorder %s20, 5
      %p278 = pnand %p276, %p277
      %p279 = pneg %p278
      // Predicated region
      $region37: #{tpu_custom_call.1} parent=5 // pred_check
        _
      $region38: #{tpu_custom_call.1} parent=5 // pred_check_branch
        %281 = sbr.rel (%p278) target = $region40
      $region39: #{tpu_custom_call.1} parent=5 // pred_region
        %s282 = ssub.s32 %s20, 1
        %s283 = sand.u32 %s45, 1
        %s284 = scalar_lea.sflag [#allocation4], %s283
        %s285 = sand.u32 %s45, 1
        %s286 = smul.addr %s285, 16
        %s287 = scalar_lea.vmem [#allocation3], %s286
        // Predicated region
        $region41: #{tpu_custom_call.1} parent=39 // pred_check
          %p288 = pneg %p58
        $region42: #{tpu_custom_call.1} parent=39 // pred_check_branch
          %290 = sbr.rel (%p288) target = $region44
        $region43: #{tpu_custom_call.1} parent=39 // pred_region
          %291 = dma.done %s284, 256
        $region44: #{tpu_custom_call.1} parent=39 // pred_fallthru
          _
        %s292 = sand.u32 %s25, 1
        %s293 = scalar_lea.sflag [#allocation7], %s292
        %s294 = sand.u32 %s71, 1
        %s295 = smul.addr %s294, 256
        %s296 = scalar_lea.vmem [#allocation6], %s295
        // Predicated region
        $region45: #{tpu_custom_call.1} parent=39 // pred_check
          %p297 = pneg %p84
        $region46: #{tpu_custom_call.1} parent=39 // pred_check_branch
          %299 = sbr.rel (%p297) target = $region48
        $region47: #{tpu_custom_call.1} parent=39 // pred_region
          %300 = dma.done %s293, 4096
        $region48: #{tpu_custom_call.1} parent=39 // pred_fallthru
          _
        %s301 = sand.u32 %s25, 1
        %s302 = scalar_lea.sflag [#allocation7], %s301
        %s303 = sand.u32 %s123, 1
        %s304 = smul.addr %s303, 256
        %s305 = scalar_lea.vmem [#allocation8], %s304
        // Predicated region
        $region49: #{tpu_custom_call.1} parent=39 // pred_check
          %p306 = pneg %p136
        $region50: #{tpu_custom_call.1} parent=39 // pred_check_branch
          %308 = sbr.rel (%p306) target = $region52
        $region51: #{tpu_custom_call.1} parent=39 // pred_region
          %309 = dma.done %s302, 4096
        $region52: #{tpu_custom_call.1} parent=39 // pred_fallthru
          _
        %s310 = sand.u32 %s45, 1
        %s311 = scalar_lea.sflag [#allocation4], %s310
        %s312 = sand.u32 %s45, 1
        %s313 = smul.addr %s312, 16
        %s314 = scalar_lea.vmem [#allocation3], %s313
        %p315 = pneg %p58
        %p316 = pneg %p55
        %s317 = sand.u32 %s25, 1
        %s318 = scalar_lea.sflag [#allocation7], %s317
        %s319 = sand.u32 %s71, 1
        %s320 = smul.addr %s319, 256
        %s321 = scalar_lea.vmem [#allocation6], %s320
        %p322 = pneg %p84
        %p323 = pneg %p81
        %s324 = smul.u32 2, %s30
        %p325 = scmp.lt.s32.totalorder %s324, 3
        %s326 = scalar_select %p325, %s324, 3
        %s327 = scalar_lea.vmem %s2, %s326
        %p328 = pneg %p110
        %p329 = pneg %p107
        %s330 = sand.u32 %s25, 1
        %s331 = scalar_lea.sflag [#allocation7], %s330
        %s332 = sand.u32 %s123, 1
        %s333 = smul.addr %s332, 256
        %s334 = scalar_lea.vmem [#allocation8], %s333
        %p335 = pneg %p136
        %p336 = pneg %p133
        %p337 = pneg %p157
        %p338 = pneg %p154
        %p339 = pneg %p183
        %p340 = pneg %p180
        %s341 = sand.u32 %s170, 1
        %s342 = scalar_lea.sflag [#allocation5], %s341
        %s343 = sand.u32 %s170, 1
        %s344 = smul.addr %s343, 16
        %s345 = scalar_lea.vmem [#allocation9], %s344
        %s346 = smul.u32 2, %s29
        %s347 = smul.u32 2, %s30
        %s348 = smul.u32 2, %s30
        %p349 = scmp.lt.s32.totalorder %s348, 3
        %s350 = scalar_select %p349, %s348, 3
        %s351 = scalar_lea.vmem %s2, %s350
        %s352 = smul.u32 2, %s30
        %s353 = smul.u32 32, %s30
        %s354 = smul.u32 2, %s29
        %p355 = scmp.eq.s32.totalorder %s30, 0
        // Predicated region
        $region53: #{tpu_custom_call.1} parent=39 // pred_check
          %p356 = pneg %p355
        $region54: #{tpu_custom_call.1} parent=39 // pred_check_branch
          %358 = sbr.rel (%p356) target = $region56
        $region55: #{tpu_custom_call.1} parent=39 // pred_region
          %359 = vst [vmem:[#allocation2] sm:$0xff] 0.0
          %360 = vst [vmem:[#allocation2 + $0x8] sm:$0xff] 0.0
        $region56: #{tpu_custom_call.1} parent=39 // pred_fallthru
          _
        %v361 = vld [vmem:[%s287] sm:$0xff]
        %v362 = vld [vmem:[%s287 + $0x8] sm:$0xff]
        %v363 = vld [vmem:[%s296] sm:$0xff]
        %v364 = vld [vmem:[%s296 + $0x8] sm:$0xff]
        %v365 = vld [vmem:[%s296 + $0x10] sm:$0xff]
        %v366 = vld [vmem:[%s296 + $0x18] sm:$0xff]
        %v367 = vld [vmem:[%s296 + $0x20] sm:$0xff]
        %v368 = vld [vmem:[%s296 + $0x28] sm:$0xff]
        %v369 = vld [vmem:[%s296 + $0x30] sm:$0xff]
        %v370 = vld [vmem:[%s296 + $0x38] sm:$0xff]
        %v371 = vld [vmem:[%s296 + $0x40] sm:$0xff]
        %v372 = vld [vmem:[%s296 + $0x48] sm:$0xff]
        %v373 = vld [vmem:[%s296 + $0x50] sm:$0xff]
        %v374 = vld [vmem:[%s296 + $0x58] sm:$0xff]
        %v375 = vld [vmem:[%s296 + $0x60] sm:$0xff]
        %v376 = vld [vmem:[%s296 + $0x68] sm:$0xff]
        %v377 = vld [vmem:[%s296 + $0x70] sm:$0xff]
        %v378 = vld [vmem:[%s296 + $0x78] sm:$0xff]
        %v379 = vld [vmem:[%s296 + $0x80] sm:$0xff]
        %v380 = vld [vmem:[%s296 + $0x88] sm:$0xff]
        %v381 = vld [vmem:[%s296 + $0x90] sm:$0xff]
        %v382 = vld [vmem:[%s296 + $0x98] sm:$0xff]
        %v383 = vld [vmem:[%s296 + $0xa0] sm:$0xff]
        %v384 = vld [vmem:[%s296 + $0xa8] sm:$0xff]
        %v385 = vld [vmem:[%s296 + $0xb0] sm:$0xff]
        %v386 = vld [vmem:[%s296 + $0xb8] sm:$0xff]
        %v387 = vld [vmem:[%s296 + $0xc0] sm:$0xff]
        %v388 = vld [vmem:[%s296 + $0xc8] sm:$0xff]
        %v389 = vld [vmem:[%s296 + $0xd0] sm:$0xff]
        %v390 = vld [vmem:[%s296 + $0xd8] sm:$0xff]
        %v391 = vld [vmem:[%s296 + $0xe0] sm:$0xff]
        %v392 = vld [vmem:[%s296 + $0xe8] sm:$0xff]
        %v393 = vld [vmem:[%s296 + $0xf0] sm:$0xff]
        %v394 = vld [vmem:[%s296 + $0xf8] sm:$0xff]
        %v395 = vld [vmem:[%s351] sm:$0x3]
        %v397 = vlaneseq
        %v398 = vshrl.u32 %v397, 7
        %v399 = vsub.s32 0, %v398
        %v400 = vrot.slane %v395, %v399
        %v401 = vlaneseq
        %v402 = vshrl.u32 %v401, 7
        %v403 = vsub.s32 1, %v402
        %v404 = vrot.slane %v395, %v403
        %407 = vmatprep.subr.mxu0 %v364
        %408 = vmatpush1.msra.mxu0 %v363
        %409 = vmatprep.subr.mxu0 %v366
        %410 = vmatpush1.msra.mxu0 %v365
        %411 = vmatprep.subr.mxu0 %v368
        %412 = vmatpush1.msra.mxu0 %v367
        %413 = vmatprep.subr.mxu0 %v370
        %414 = vmatpush1.msra.mxu0 %v369
        %415 = vmatprep.subr.mxu0 %v372
        %416 = vmatpush1.msra.mxu0 %v371
        %417 = vmatprep.subr.mxu0 %v374
        %418 = vmatpush1.msra.mxu0 %v373
        %419 = vmatprep.subr.mxu0 %v376
        %420 = vmatpush1.msra.mxu0 %v375
        %421 = vmatprep.subr.mxu0 %v378
        %422 = vmatpush1.msra.mxu0 %v377
        %423 = vmatprep.subr.mxu0 %v380
        %424 = vmatpush1.msra.mxu0 %v379
        %425 = vmatprep.subr.mxu0 %v382
        %426 = vmatpush1.msra.mxu0 %v381
        %427 = vmatprep.subr.mxu0 %v384
        %428 = vmatpush1.msra.mxu0 %v383
        %429 = vmatprep.subr.mxu0 %v386
        %430 = vmatpush1.msra.mxu0 %v385
        %431 = vmatprep.subr.mxu0 %v388
        %432 = vmatpush1.msra.mxu0 %v387
        %433 = vmatprep.subr.mxu0 %v390
        %434 = vmatpush1.msra.mxu0 %v389
        %435 = vmatprep.subr.mxu0 %v392
        %436 = vmatpush1.msra.mxu0 %v391
        %437 = vmatprep.subr.mxu0 %v394
        %438 = vmatpush1.msra.mxu0 %v393
        %439 = vmatprep.subr.mxu0 0.0
        %440 = vmatpush1.msra.mxu0 0.0
        %441 = vmatprep.subr.mxu0 0.0
        %442 = vmatpush1.msra.mxu0 0.0
        %443 = vmatprep.subr.mxu0 0.0
        %444 = vmatpush1.msra.mxu0 0.0
        %445 = vmatprep.subr.mxu0 0.0
        %446 = vmatpush1.msra.mxu0 0.0
        %447 = vmatprep.subr.mxu0 0.0
        %448 = vmatpush1.msra.mxu0 0.0
        %449 = vmatprep.subr.mxu0 0.0
        %450 = vmatpush1.msra.mxu0 0.0
        %451 = vmatprep.subr.mxu0 0.0
        %452 = vmatpush1.msra.mxu0 0.0
        %453 = vmatprep.subr.mxu0 0.0
        %454 = vmatpush1.msra.mxu0 0.0
        %455 = vmatprep.subr.mxu0 0.0
        %456 = vmatpush1.msra.mxu0 0.0
        %457 = vmatprep.subr.mxu0 0.0
        %458 = vmatpush1.msra.mxu0 0.0
        %459 = vmatprep.subr.mxu0 0.0
        %460 = vmatpush1.msra.mxu0 0.0
        %461 = vmatprep.subr.mxu0 0.0
        %462 = vmatpush1.msra.mxu0 0.0
        %463 = vmatprep.subr.mxu0 0.0
        %464 = vmatpush1.msra.mxu0 0.0
        %465 = vmatprep.subr.mxu0 0.0
        %466 = vmatpush1.msra.mxu0 0.0
        %467 = vmatprep.subr.mxu0 0.0
        %468 = vmatpush1.msra.mxu0 0.0
        %469 = vmatprep.subr.mxu0 0.0
        %470 = vmatpush1.msra.mxu0 0.0
        %471 = vmatprep.mubr.f32.mxu0 0.0
        %472 = vmatmul.mubr.f32.gmra.mrb[0].mxu0 %v361
        %v473 = vpop.f32.mrb[0].mxu0
        %v474 = vadd.f32 %v400, %v473
        %v475 = vpop.f32.mrb[0].mxu0
        %v476 = vadd.f32 %v404, %v475
        %477 = vmatprep.mubr.f32.mxu0 0.0
        %478 = vmatmul.mubr.f32.gmra.mrb[0].mxu0 %v362
        %v479 = vpop.f32.mrb[0].mxu0
        %v480 = vadd.f32 %v400, %v479
        %v481 = vpop.f32.mrb[0].mxu0
        %v482 = vadd.f32 %v404, %v481
        %483 = vdwg.mxu0
        %v484 = vmax.f32 %v474, 0.0
        %v485 = vmax.f32 %v476, 0.0
        %v486 = vmax.f32 %v480, 0.0
        %v487 = vmax.f32 %v482, 0.0
        %v488 = vld [vmem:[#allocation2] sm:$0xff]
        %v489 = vld [vmem:[#allocation2 + $0x8] sm:$0xff]
        %v490 = vld [vmem:[%s305] sm:$0xff]
        %v491 = vld [vmem:[%s305 + $0x8] sm:$0xff]
        %v492 = vld [vmem:[%s305 + $0x10] sm:$0xff]
        %v493 = vld [vmem:[%s305 + $0x18] sm:$0xff]
        %v494 = vld [vmem:[%s305 + $0x20] sm:$0xff]
        %v495 = vld [vmem:[%s305 + $0x28] sm:$0xff]
        %v496 = vld [vmem:[%s305 + $0x30] sm:$0xff]
        %v497 = vld [vmem:[%s305 + $0x38] sm:$0xff]
        %v498 = vld [vmem:[%s305 + $0x40] sm:$0xff]
        %v499 = vld [vmem:[%s305 + $0x48] sm:$0xff]
        %v500 = vld [vmem:[%s305 + $0x50] sm:$0xff]
        %v501 = vld [vmem:[%s305 + $0x58] sm:$0xff]
        %v502 = vld [vmem:[%s305 + $0x60] sm:$0xff]
        %v503 = vld [vmem:[%s305 + $0x68] sm:$0xff]
        %v504 = vld [vmem:[%s305 + $0x70] sm:$0xff]
        %v505 = vld [vmem:[%s305 + $0x78] sm:$0xff]
        %v506 = vld [vmem:[%s305 + $0x80] sm:$0xff]
        %v507 = vld [vmem:[%s305 + $0x88] sm:$0xff]
        %v508 = vld [vmem:[%s305 + $0x90] sm:$0xff]
        %v509 = vld [vmem:[%s305 + $0x98] sm:$0xff]
        %v510 = vld [vmem:[%s305 + $0xa0] sm:$0xff]
        %v511 = vld [vmem:[%s305 + $0xa8] sm:$0xff]
        %v512 = vld [vmem:[%s305 + $0xb0] sm:$0xff]
        %v513 = vld [vmem:[%s305 + $0xb8] sm:$0xff]
        %v514 = vld [vmem:[%s305 + $0xc0] sm:$0xff]
        %v515 = vld [vmem:[%s305 + $0xc8] sm:$0xff]
        %v516 = vld [vmem:[%s305 + $0xd0] sm:$0xff]
        %v517 = vld [vmem:[%s305 + $0xd8] sm:$0xff]
        %v518 = vld [vmem:[%s305 + $0xe0] sm:$0xff]
        %v519 = vld [vmem:[%s305 + $0xe8] sm:$0xff]
        %v520 = vld [vmem:[%s305 + $0xf0] sm:$0xff]
        %v521 = vld [vmem:[%s305 + $0xf8] sm:$0xff]
        %522 = vmatprep.subr.mxu0 0.0
        %523 = vmatpush1.msra.mxu0 %v490
        %524 = vmatprep.subr.mxu0 0.0
        %525 = vmatpush1.msra.mxu0 %v491
        %526 = vmatprep.subr.mxu0 0.0
        %527 = vmatpush1.msra.mxu0 %v492
        %528 = vmatprep.subr.mxu0 0.0
        %529 = vmatpush1.msra.mxu0 %v493
        %530 = vmatprep.subr.mxu0 0.0
        %531 = vmatpush1.msra.mxu0 %v494
        %532 = vmatprep.subr.mxu0 0.0
        %533 = vmatpush1.msra.mxu0 %v495
        %534 = vmatprep.subr.mxu0 0.0
        %535 = vmatpush1.msra.mxu0 %v496
        %536 = vmatprep.subr.mxu0 0.0
        %537 = vmatpush1.msra.mxu0 %v497
        %538 = vmatprep.subr.mxu0 0.0
        %539 = vmatpush1.msra.mxu0 %v498
        %540 = vmatprep.subr.mxu0 0.0
        %541 = vmatpush1.msra.mxu0 %v499
        %542 = vmatprep.subr.mxu0 0.0
        %543 = vmatpush1.msra.mxu0 %v500
        %544 = vmatprep.subr.mxu0 0.0
        %545 = vmatpush1.msra.mxu0 %v501
        %546 = vmatprep.subr.mxu0 0.0
        %547 = vmatpush1.msra.mxu0 %v502
        %548 = vmatprep.subr.mxu0 0.0
        %549 = vmatpush1.msra.mxu0 %v503
        %550 = vmatprep.subr.mxu0 0.0
        %551 = vmatpush1.msra.mxu0 %v504
        %552 = vmatprep.subr.mxu0 0.0
        %553 = vmatpush1.msra.mxu0 %v505
        %554 = vmatprep.subr.mxu0 0.0
        %555 = vmatpush1.msra.mxu0 %v506
        %556 = vmatprep.subr.mxu0 0.0
        %557 = vmatpush1.msra.mxu0 %v507
        %558 = vmatprep.subr.mxu0 0.0
        %559 = vmatpush1.msra.mxu0 %v508
        %560 = vmatprep.subr.mxu0 0.0
        %561 = vmatpush1.msra.mxu0 %v509
        %562 = vmatprep.subr.mxu0 0.0
        %563 = vmatpush1.msra.mxu0 %v510
        %564 = vmatprep.subr.mxu0 0.0
        %565 = vmatpush1.msra.mxu0 %v511
        %566 = vmatprep.subr.mxu0 0.0
        %567 = vmatpush1.msra.mxu0 %v512
        %568 = vmatprep.subr.mxu0 0.0
        %569 = vmatpush1.msra.mxu0 %v513
        %570 = vmatprep.subr.mxu0 0.0
        %571 = vmatpush1.msra.mxu0 %v514
        %572 = vmatprep.subr.mxu0 0.0
        %573 = vmatpush1.msra.mxu0 %v515
        %574 = vmatprep.subr.mxu0 0.0
        %575 = vmatpush1.msra.mxu0 %v516
        %576 = vmatprep.subr.mxu0 0.0
        %577 = vmatpush1.msra.mxu0 %v517
        %578 = vmatprep.subr.mxu0 0.0
        %579 = vmatpush1.msra.mxu0 %v518
        %580 = vmatprep.subr.mxu0 0.0
        %581 = vmatpush1.msra.mxu0 %v519
        %582 = vmatprep.subr.mxu0 0.0
        %583 = vmatpush1.msra.mxu0 %v520
        %584 = vmatprep.subr.mxu0 0.0
        %585 = vmatpush1.msra.mxu0 %v521
        %586 = vmatprep.mubr.f32.mxu0 %v485
        %587 = vmatmul.mubr.f32.gmra.mrb[0].mxu0 %v484
        %v588 = vpop.f32.mrb[0].mxu0
        %v589 = vadd.f32 0.0, %v588
        %v590 = vpop.f32.mrb[0].mxu0
        %591 = vmatprep.mubr.f32.mxu0 %v487
        %592 = vmatmul.mubr.f32.gmra.mrb[0].mxu0 %v486
        %v593 = vpop.f32.mrb[0].mxu0
        %v594 = vadd.f32 0.0, %v593
        %v595 = vpop.f32.mrb[0].mxu0
        %596 = vdwg.mxu0
        %v597 = vadd.f32 %v488, %v589
        %v598 = vadd.f32 %v489, %v594
        %599 = vst [vmem:[#allocation2] sm:$0xff] %v597
        %600 = vst [vmem:[#allocation2 + $0x8] sm:$0xff] %v598
        %p601 = scmp.eq.s32.totalorder %s30, 1
        // Predicated region
        $region57: #{tpu_custom_call.1} parent=39 // pred_check
          %p602 = pneg %p601
        $region58: #{tpu_custom_call.1} parent=39 // pred_check_branch
          %604 = sbr.rel (%p602) target = $region60
        $region59: #{tpu_custom_call.1} parent=39 // pred_region
          %v605 = vld [vmem:[#allocation2] sm:$0xff]
          %v606 = vld [vmem:[#allocation2 + $0x8] sm:$0xff]
          %v607 = vld [vmem:[%s4] sm:$0x1]
          %v609 = vlaneseq
          %v610 = vshrl.u32 %v609, 7
          %v611 = vsub.s32 0, %v610
          %v612 = vrot.slane %v607, %v611
          %v614 = vadd.f32 %v605, %v612
          %v615 = vadd.f32 %v606, %v612
          %616 = vst [vmem:[%s345] sm:$0xff] %v614
          %617 = vst [vmem:[%s345 + $0x8] sm:$0xff] %v615
        $region60: #{tpu_custom_call.1} parent=39 // pred_fallthru
          _
        %s618 = sand.u32 %s170, 1
        %s619 = scalar_lea.sflag [#allocation5], %s618
        %s620 = sand.u32 %s170, 1
        %s621 = smul.addr %s620, 16
        %s622 = scalar_lea.vmem [#allocation9], %s621
        // Predicated region
        $region61: #{tpu_custom_call.1} parent=39 // pred_check
          %p623 = pneg %p180
        $region62: #{tpu_custom_call.1} parent=39 // pred_check_branch
          %625 = sbr.rel (%p623) target = $region64
        $region63: #{tpu_custom_call.1} parent=39 // pred_region
          %s626 = smul.u32 2, %s29
          %s628 = ssub.s32 256, 256
          %629 = vsyncadd %s619, %s628
          %s630 = smul.addr %s626, 128
          %s631 = scalar_lea.hbm %s5, %s630
          %s632 = sshll.u32 %s622, 4
          %s633 = int_to_ptr.vmem [resolvable:$true] %s632
          %638 = dma.vmem_to_hbm [thread:$0]  %s633, 256, %s631, %s619, 128, 128, 8
        $region64: #{tpu_custom_call.1} parent=39 // pred_fallthru
          _
      $region40: #{tpu_custom_call.1} parent=5 // pred_fallthru
        _
      %p639 = scmp.le.s32.totalorder 2, %s20
      // Predicated region
      $region65: #{tpu_custom_call.1} parent=5 // pred_check
        %p640 = pneg %p639
      $region66: #{tpu_custom_call.1} parent=5 // pred_check_branch
        %642 = sbr.rel (%p640) target = $region68
      $region67: #{tpu_custom_call.1} parent=5 // pred_region
        %s643 = ssub.s32 %s20, 2
        // Predicated region
        $region69: #{tpu_custom_call.1} parent=67 // pred_check
          %p644 = pneg %p186
        $region70: #{tpu_custom_call.1} parent=67 // pred_check_branch
          %646 = sbr.rel (%p644) target = $region72
        $region71: #{tpu_custom_call.1} parent=67 // pred_region
          %s647 = sand.u32 %s171, 1
          %s648 = scalar_lea.sflag [#allocation5], %s647
          %s649 = sand.u32 %s171, 1
          %s650 = smul.addr %s649, 16
          %s651 = scalar_lea.vmem [#allocation9], %s650
          %652 = dma.done %s648, 256
        $region72: #{tpu_custom_call.1} parent=67 // pred_fallthru
          _
      $region68: #{tpu_custom_call.1} parent=5 // pred_fallthru
        _
    $region6: #{tpu_custom_call.1} parent=1 // loop_footer
      %s24 = sadd.s32 1, %s20
    $region7: #{tpu_custom_call.1} parent=1 // loop_footer_branch
      %19 = sbr.rel target = $region3
    $region8: #{tpu_custom_call.1} parent=1 // loop_exit
      _
    %653 = vsyncpa [#allocation4], 1
    %s654 = scalar_lea.sflag [#allocation4], 1
    %655 = vsyncpa %s654, 1
    %656 = vsyncpa [#allocation7], 1
    %s657 = scalar_lea.sflag [#allocation7], 1
    %658 = vsyncpa %s657, 1
    %659 = vsyncpa [#allocation5], 1
    %s660 = scalar_lea.sflag [#allocation5], 1
    %661 = vsyncpa %s660, 1

</llo_original>
